<compile_context>
chip_gen: v7x
topology: tpu7x:2x2x1
jax: 0.10.0
libtpu: 0.0.40
codegen_flags: <defaults>
</compile_context>

<pallas_src>
import numpy as np
import jax
import jax.numpy as jnp
from jax.experimental import pallas as pl
from jax.experimental.pallas import tpu as pltpu


def _round_up(v: int, m: int) -> int:
    return (v + m - 1) // m * m


def _round_down(v: int, m: int) -> int:
    return (v // m) * m


def _rc_ut_order(ut_len: int, diagonal_offset: int) -> np.ndarray:
    """Exactly mirrors the numpy index construction in the PyTorch module."""
    seq_len = int(np.sqrt(2 * ut_len + 0.25) - 0.5)
    seq_len += diagonal_offset
    ut_indexes = np.triu_indices(seq_len, diagonal_offset)
    mat_ut_indexes = np.zeros(shape=(seq_len, seq_len), dtype=np.int64)
    mat_ut_indexes[ut_indexes] = np.arange(ut_len)
    mask_ut = np.zeros(shape=(seq_len, seq_len), dtype=bool)
    mask_ut[ut_indexes] = True
    mask_ld = ~mask_ut
    mat_indexes = mat_ut_indexes + np.multiply(mask_ld, mat_ut_indexes.T)
    mat_rc_indexes = mat_indexes[::-1, ::-1]
    return mat_rc_indexes[ut_indexes].astype(np.int64)  # (ut_len,)


def _perm_gather_kernel(p_ref, x_ref, o_ref):
    # p_ref: (ut_len, ut_len) one-hot P, VMEM-resident (constant block index).
    #   P[k, j] = 1 iff k == perm[j]  =>  (x @ P)[r, j] = x[r, perm[j]]
    # x_ref / o_ref: (TM, ut_len) row tile. Exact for finite floats: each
    # output lane is a single 1.0 * x term accumulated in f32.
    o_ref[...] = jnp.dot(
        x_ref[...], p_ref[...], preferred_element_type=jnp.float32
    ).astype(o_ref.dtype)


def switch_reverse_triu(x, reverse: bool, diagonal_offset: int):
    if not reverse:
        return x  # identity branch: no data movement needed

    bs, num, ut_len = x.shape
    perm = _rc_ut_order(ut_len, diagonal_offset)

    if not jnp.issubdtype(x.dtype, jnp.floating):
        # TODO(synk): integer inputs cannot use the MXU one-hot path (and v7x
        # MXU has no int support); fall back to a plain-JAX gather.
        return jnp.take(x, jnp.asarray(perm), axis=-1)

    R = bs * num
    itemsize = x.dtype.itemsize
    row_mult = max(8, 32 // itemsize)  # sublane packing (8 f32, 16 bf16)

    # One-hot permutation matrix, precomputed host-side in x's dtype.
    p_np = np.zeros((ut_len, ut_len), dtype=np.float32)
    p_np[perm, np.arange(ut_len)] = 1.0
    p_mat = jnp.asarray(p_np, dtype=x.dtype)

    # Generation-aware VMEM budgeting (v5e/v6e: 128 MiB, v7x: 64 MiB per TC).
    try:
        info = pltpu.get_tpu_info()
        vmem_cap = int(getattr(info, "vmem_capacity_bytes", 64 * 1024 * 1024))
    except Exception:  # pragma: no cover - conservative fallback
        vmem_cap = 64 * 1024 * 1024
    budget = int(0.6 * vmem_cap)

    Lp = _round_up(ut_len, 128)                       # internal lane padding
    p_bytes = 2 * _round_up(ut_len, row_mult) * Lp * itemsize  # resident P (x2 safety)
    bytes_per_row = 2 * 2 * Lp * itemsize             # (x + out) double-buffered

    tm_by_vmem = _round_down(max(budget - p_bytes, 0) // bytes_per_row, row_mult)
    TM = min(2048, _round_up(R, row_mult), max(tm_by_vmem, row_mult))
    # Guarantee >= 2 grid steps when possible so the "parallel" row axis can
    # shard across v7x's two TensorCores (one extra ~0.35us step on v5e/v6e).
    if R >= 2 * row_mult:
        TM = min(TM, _round_up((R + 1) // 2, row_mult))
    TM = max(TM, row_mult)

    grid = (pl.cdiv(R, TM),)

    vmem_needed = p_bytes + 2 * 2 * TM * Lp * itemsize + (2 << 20)
    vmem_limit = int(min(max(vmem_needed, 16 * 1024 * 1024), int(0.85 * vmem_cap)))

    cost = pl.CostEstimate(
        flops=2 * R * ut_len * ut_len,
        transcendentals=0,
        bytes_accessed=2 * R * ut_len * itemsize + ut_len * ut_len * itemsize,
    )

    x2 = x.reshape(R, ut_len)  # leading-dim merge: no data movement

    out = pl.pallas_call(
        _perm_gather_kernel,
        out_shape=jax.ShapeDtypeStruct((R, ut_len), x.dtype),
        grid_spec=pltpu.PrefetchScalarGridSpec(
            num_scalar_prefetch=0,
            grid=grid,
            in_specs=[
                # P: constant block index -> VMEM-resident, DMA'd once per core.
                pl.BlockSpec((ut_len, ut_len), lambda i: (0, 0)),
                # x row tile; last dim = full array dim (exempt from 128 rule),
                # ragged row tail handled by the masked boundary block.
                pl.BlockSpec((TM, ut_len), lambda i: (i, 0)),
            ],
            out_specs=pl.BlockSpec((TM, ut_len), lambda i: (i, 0)),
        ),
        compiler_params=pltpu.CompilerParams(
            dimension_semantics=("parallel",),
            vmem_limit_bytes=vmem_limit,
        ),
        cost_estimate=cost,
    )(p_mat, x2)

    return out.reshape(bs, num, ut_len)


if __name__ == "__main__":
    diagonal_offset = 2
    key = jax.random.PRNGKey(0)

    # --- Small shape consistent with the forward: seq_len=18 -> ut_len=136 ---
    bs, num, ut_len = 2, 4, 136
    x = jax.random.normal(key, (bs, num, ut_len), dtype=jnp.float32)

    y = switch_reverse_triu(x, reverse=True, diagonal_offset=diagonal_offset)
    y = jax.block_until_ready(y)
    y_id = switch_reverse_triu(x, reverse=False, diagonal_offset=diagonal_offset)
    y_id = jax.block_until_ready(y_id)

    perm = jnp.asarray(_rc_ut_order(ut_len, diagonal_offset))
    ref = jnp.take(x, perm, axis=-1)
    assert y.shape == (bs, num, ut_len)
    assert jnp.array_equal(y, ref)
    assert jnp.array_equal(y_id, x)

    # --- bf16 exactness check (single 1.0*x term per output lane) ---
    x_bf = x.astype(jnp.bfloat16)
    y_bf = jax.block_until_ready(
        switch_reverse_triu(x_bf, reverse=True, diagonal_offset=diagonal_offset)
    )
    assert jnp.array_equal(y_bf, jnp.take(x_bf, perm, axis=-1))

    # --- Larger ut_len + ragged row tail (multiple grid steps, masked tile) ---
    bs2, num2, ut_len2 = 3, 7, 528  # seq_len=34 -> ut_len=32*33//2=528
    x2 = jax.random.normal(jax.random.PRNGKey(1), (bs2, num2, ut_len2),
                           dtype=jnp.float32)
    y2 = jax.block_until_ready(
        switch_reverse_triu(x2, reverse=True, diagonal_offset=diagonal_offset)
    )
    perm2 = jnp.asarray(_rc_ut_order(ut_len2, diagonal_offset))
    assert jnp.array_equal(y2, jnp.take(x2, perm2, axis=-1))

    print("KERNEL_OK")
</pallas_src>

<mosaic_0001>
module attributes {stable_mosaic.version = 11 : i64} {
  func.func @_perm_gather_kernel(%arg0: i32, %arg1: memref<136x136xf32, #tpu.memory_space<vmem>>, %arg2: memref<8x136xf32, #tpu.memory_space<vmem>>, %arg3: memref<8x136xf32, #tpu.memory_space<vmem>>) attributes {dimension_semantics = [#tpu.dimension_semantics<parallel>], iteration_bounds = array<i64: 1>, scalar_prefetch = 0 : i64, scratch_operands = 0 : i64, tpu.core_type = #tpu.core_type<tc>, window_params = [{pipeline_mode = #tpu.pipeline_mode<synchronous>, transform_indices = @transform_0, window_bounds = array<i64: 136, 136>}, {transform_indices = @transform_1, window_bounds = array<i64: 8, 136>}, {transform_indices = @transform_2, window_bounds = array<i64: 8, 136>}]} {
    %c0 = arith.constant 0 : index
    %c0_0 = arith.constant 0 : index
    %0 = vector.load %arg2[%c0, %c0_0] : memref<8x136xf32, #tpu.memory_space<vmem>>, vector<8x136xf32>
    %c0_1 = arith.constant 0 : index
    %c0_2 = arith.constant 0 : index
    %1 = vector.load %arg1[%c0_1, %c0_2] : memref<136x136xf32, #tpu.memory_space<vmem>>, vector<136x136xf32>
    %cst = arith.constant dense<0.000000e+00> : vector<8x136xf32>
    %2 = tpu.matmul %0, %1, %cst {dimension_numbers = #tpu.dot_dimension_numbers<[1], [0], [0], [1], [0, 0, 1, 1], [], []>} : vector<8x136xf32>, vector<136x136xf32>, vector<8x136xf32> -> vector<8x136xf32>
    %c0_3 = arith.constant 0 : index
    %c0_4 = arith.constant 0 : index
    %3 = vector.load %arg3[%c0_3, %c0_4] : memref<8x136xf32, #tpu.memory_space<vmem>>, vector<8x136xf32>
    tpu.vector_store %arg3[%c0_3, %c0_4], %2 {strides = array<i32>} : memref<8x136xf32, #tpu.memory_space<vmem>>, vector<8x136xf32>,
    return
  }
  func.func @transform_0(%arg0: i32) -> (i32, i32) {
    %c0_i32 = arith.constant 0 : i32
    %c0_i32_0 = arith.constant 0 : i32
    %c0_i32_1 = arith.constant 0 : i32
    return %c0_i32, %c0_i32_0 : i32, i32
  }
  func.func @transform_1(%arg0: i32) -> (i32, i32) {
    %c0_i32 = arith.constant 0 : i32
    %c0_i32_0 = arith.constant 0 : i32
    return %arg0, %c0_i32 : i32, i32
  }
  func.func @transform_2(%arg0: i32) -> (i32, i32) {
    %c0_i32 = arith.constant 0 : i32
    %c0_i32_0 = arith.constant 0 : i32
    return %arg0, %c0_i32 : i32, i32
  }
}

</mosaic_0001>

<llo_original>
// kernel: tpu_custom_call.1
$region0: #{tpu_custom_call.1}
  #allocation0 [shape = 'u32[]', space=smem, size = 0x4, offset = 0x4, fixed_abs, tag = 'smem constant byte address 0x4 - core index']
  #allocation1 [shape = 'u32[144,128]{1,0:T(1,128)}', space=vmem, size = 0x12000, scoped, tag = 'internal scratch']
  %s0 = inlined_call_operand.hbm [shape: f32[136,136], index: 0, kind: input, shape index: {}]
  %s1 = inlined_call_operand.hbm [shape: f32[8,136], index: 1, kind: input, shape index: {}]
  %s2 = inlined_call_operand.hbm [shape: f32[8,136], index: 2, kind: output, shape index: {}]
  %s3 = sld [smem:[#allocation0]]
  $region26: #{tpu_custom_call.1} parent=0
    _
  %s5 = ssub.s32 1, %s3
  %s6 = scalar_select 0, %s5, %s3
  $region1: #{tpu_custom_call.1} parent=0
    #allocation2 [shape = 'u8[139264]{0}', space=vmem, size = 0x22000, scoped, tag = 'input window, operand 0, single buffered']
    #allocation3 [shape = 's32[1]{0}', space=sflag, size = 0x4, scoped, tag = 'scoped memory for tpu_custom_call.1']
    #allocation4 [shape = 's32[1]{0}', space=sflag, size = 0x4, scoped, tag = 'scoped memory for tpu_custom_call.1']
    #allocation5 [shape = 'u8[8192]{0}', space=vmem, size = 0x2000, scoped, tag = 'input window, operand 1, single buffered']
    #allocation6 [shape = 's32[1]{0}', space=sflag, size = 0x4, scoped, tag = 'scoped memory for tpu_custom_call.1']
    #allocation7 [shape = 'u8[8192]{0}', space=vmem, size = 0x2000, scoped, tag = 'output window, operand 0, single buffered']
    %7 = vsyncpa [#allocation3], 0
    %8 = vsyncpa [#allocation6], 0
    %9 = vsyncpa [#allocation4], 0
    // Predicated region
    $region2: #{tpu_custom_call.1} parent=1 // pred_check
      _
    $region3: #{tpu_custom_call.1} parent=1 // pred_check_branch
      %11 = sbr.rel (0) target = $region5
    $region4: #{tpu_custom_call.1} parent=1 // pred_region
      %s13 = ssub.s32 4352, 4352
      %14 = vsyncadd [#allocation3], %s13
      %s15 = sshll.u32 [#allocation2], 4
      %s16 = int_to_ptr.vmem [resolvable:$true] %s15
      %21 = dma.hbm_to_vmem [thread:$0]  %s0, 4352, %s16, [#allocation3], 256, 256, 16
    $region5: #{tpu_custom_call.1} parent=1 // pred_fallthru
      _
    // Predicated region
    $region6: #{tpu_custom_call.1} parent=1 // pred_check
      _
    $region7: #{tpu_custom_call.1} parent=1 // pred_check_branch
      %23 = sbr.rel (0) target = $region9
    $region8: #{tpu_custom_call.1} parent=1 // pred_region
      %s25 = ssub.s32 256, 256
      %26 = vsyncadd [#allocation6], %s25
      %s28 = sshll.u32 [#allocation5], 4
      %s29 = int_to_ptr.vmem [resolvable:$true] %s28
      %31 = dma.hbm_to_vmem [thread:$0]  %s1, 256, %s29, [#allocation6]
    $region9: #{tpu_custom_call.1} parent=1 // pred_fallthru
      _
    // Predicated region
    $region10: #{tpu_custom_call.1} parent=1 // pred_check
      _
    $region11: #{tpu_custom_call.1} parent=1 // pred_check_branch
      %33 = sbr.rel (0) target = $region13
    $region12: #{tpu_custom_call.1} parent=1 // pred_region
      %34 = dma.done [#allocation3], 4352
    $region13: #{tpu_custom_call.1} parent=1 // pred_fallthru
      _
    // Predicated region
    $region14: #{tpu_custom_call.1} parent=1 // pred_check
      _
    $region15: #{tpu_custom_call.1} parent=1 // pred_check_branch
      %36 = sbr.rel (0) target = $region17
    $region16: #{tpu_custom_call.1} parent=1 // pred_region
      %37 = dma.done [#allocation6], 256
    $region17: #{tpu_custom_call.1} parent=1 // pred_fallthru
      _
    %v38 = vld [vmem:[#allocation5] sm:$0xff]
    %v39 = vld [vmem:[#allocation5 + $0x8] sm:$0xff]
    %v40 = vld [vmem:[#allocation2] sm:$0xff]
    %v41 = vld [vmem:[#allocation2 + $0x8] sm:$0xff]
    %v42 = vld [vmem:[#allocation2 + $0x10] sm:$0xff]
    %v43 = vld [vmem:[#allocation2 + $0x18] sm:$0xff]
    %v44 = vld [vmem:[#allocation2 + $0x20] sm:$0xff]
    %v45 = vld [vmem:[#allocation2 + $0x28] sm:$0xff]
    %v46 = vld [vmem:[#allocation2 + $0x30] sm:$0xff]
    %v47 = vld [vmem:[#allocation2 + $0x38] sm:$0xff]
    %v48 = vld [vmem:[#allocation2 + $0x40] sm:$0xff]
    %v49 = vld [vmem:[#allocation2 + $0x48] sm:$0xff]
    %v50 = vld [vmem:[#allocation2 + $0x50] sm:$0xff]
    %v51 = vld [vmem:[#allocation2 + $0x58] sm:$0xff]
    %v52 = vld [vmem:[#allocation2 + $0x60] sm:$0xff]
    %v53 = vld [vmem:[#allocation2 + $0x68] sm:$0xff]
    %v54 = vld [vmem:[#allocation2 + $0x70] sm:$0xff]
    %v55 = vld [vmem:[#allocation2 + $0x78] sm:$0xff]
    %v56 = vld [vmem:[#allocation2 + $0x80] sm:$0xff]
    %v57 = vld [vmem:[#allocation2 + $0x88] sm:$0xff]
    %v58 = vld [vmem:[#allocation2 + $0x90] sm:$0xff]
    %v59 = vld [vmem:[#allocation2 + $0x98] sm:$0xff]
    %v60 = vld [vmem:[#allocation2 + $0xa0] sm:$0xff]
    %v61 = vld [vmem:[#allocation2 + $0xa8] sm:$0xff]
    %v62 = vld [vmem:[#allocation2 + $0xb0] sm:$0xff]
    %v63 = vld [vmem:[#allocation2 + $0xb8] sm:$0xff]
    %v64 = vld [vmem:[#allocation2 + $0xc0] sm:$0xff]
    %v65 = vld [vmem:[#allocation2 + $0xc8] sm:$0xff]
    %v66 = vld [vmem:[#allocation2 + $0xd0] sm:$0xff]
    %v67 = vld [vmem:[#allocation2 + $0xd8] sm:$0xff]
    %v68 = vld [vmem:[#allocation2 + $0xe0] sm:$0xff]
    %v69 = vld [vmem:[#allocation2 + $0xe8] sm:$0xff]
    %v70 = vld [vmem:[#allocation2 + $0xf0] sm:$0xff]
    %v71 = vld [vmem:[#allocation2 + $0xf8] sm:$0xff]
    %v72 = vld [vmem:[#allocation2 + $0x100] sm:$0xff]
    %v73 = vld [vmem:[#allocation2 + $0x108] sm:$0xff]
    %vm74 = vcmask 64512
    %v76 = vsel %vm74, %v39, 0
    %78 = vmatprep.subr.mxu0 %v41
    %79 = vmatpush1.msra.mxu0 %v40
    %80 = vmatprep.subr.mxu0 %v43
    %81 = vmatpush1.msra.mxu0 %v42
    %82 = vmatprep.subr.mxu0 %v45
    %83 = vmatpush1.msra.mxu0 %v44
    %84 = vmatprep.subr.mxu0 %v47
    %85 = vmatpush1.msra.mxu0 %v46
    %86 = vmatprep.subr.mxu0 %v49
    %87 = vmatpush1.msra.mxu0 %v48
    %88 = vmatprep.subr.mxu0 %v51
    %89 = vmatpush1.msra.mxu0 %v50
    %90 = vmatprep.subr.mxu0 %v53
    %91 = vmatpush1.msra.mxu0 %v52
    %92 = vmatprep.subr.mxu0 %v55
    %93 = vmatpush1.msra.mxu0 %v54
    %94 = vmatprep.subr.mxu0 %v57
    %95 = vmatpush1.msra.mxu0 %v56
    %96 = vmatprep.subr.mxu0 %v59
    %97 = vmatpush1.msra.mxu0 %v58
    %98 = vmatprep.subr.mxu0 %v61
    %99 = vmatpush1.msra.mxu0 %v60
    %100 = vmatprep.subr.mxu0 %v63
    %101 = vmatpush1.msra.mxu0 %v62
    %102 = vmatprep.subr.mxu0 %v65
    %103 = vmatpush1.msra.mxu0 %v64
    %104 = vmatprep.subr.mxu0 %v67
    %105 = vmatpush1.msra.mxu0 %v66
    %106 = vmatprep.subr.mxu0 %v69
    %107 = vmatpush1.msra.mxu0 %v68
    %108 = vmatprep.subr.mxu0 %v71
    %109 = vmatpush1.msra.mxu0 %v70
    %110 = vmatprep.subr.mxu0 %v73
    %111 = vmatpush1.msra.mxu0 %v72
    %112 = vmatprep.subr.mxu0 0.0
    %113 = vmatpush1.msra.mxu0 0.0
    %114 = vmatprep.subr.mxu0 0.0
    %115 = vmatpush1.msra.mxu0 0.0
    %116 = vmatprep.subr.mxu0 0.0
    %117 = vmatpush1.msra.mxu0 0.0
    %118 = vmatprep.subr.mxu0 0.0
    %119 = vmatpush1.msra.mxu0 0.0
    %120 = vmatprep.subr.mxu0 0.0
    %121 = vmatpush1.msra.mxu0 0.0
    %122 = vmatprep.subr.mxu0 0.0
    %123 = vmatpush1.msra.mxu0 0.0
    %124 = vmatprep.subr.mxu0 0.0
    %125 = vmatpush1.msra.mxu0 0.0
    %126 = vmatprep.subr.mxu0 0.0
    %127 = vmatpush1.msra.mxu0 0.0
    %128 = vmatprep.subr.mxu0 0.0
    %129 = vmatpush1.msra.mxu0 0.0
    %130 = vmatprep.subr.mxu0 0.0
    %131 = vmatpush1.msra.mxu0 0.0
    %132 = vmatprep.subr.mxu0 0.0
    %133 = vmatpush1.msra.mxu0 0.0
    %134 = vmatprep.subr.mxu0 0.0
    %135 = vmatpush1.msra.mxu0 0.0
    %136 = vmatprep.subr.mxu0 0.0
    %137 = vmatpush1.msra.mxu0 0.0
    %138 = vmatprep.subr.mxu0 0.0
    %139 = vmatpush1.msra.mxu0 0.0
    %140 = vmatprep.subr.mxu0 0.0
    %141 = vmatpush1.msra.mxu0 0.0
    %142 = vmatprep.mubr.f32.mxu0 %v76
    %143 = vmatmul.mubr.f32.gmra.mrb[0].mxu0 %v38
    %v144 = vpop.f32.mrb[0].mxu0
    %v145 = vadd.f32 0.0, %v144
    %v146 = vpop.f32.mrb[0].mxu0
    %v147 = vadd.f32 0.0, %v146
    %148 = vdwg.mxu0
    %149 = vst [vmem:[#allocation7] sm:$0xff] %v145
    %150 = vst.msk [vmem:[#allocation7 + $0x8] sm:$0xff] %vm74, %v147
    // Predicated region
    $region18: #{tpu_custom_call.1} parent=1 // pred_check
      _
    $region19: #{tpu_custom_call.1} parent=1 // pred_check_branch
      %152 = sbr.rel (0) target = $region21
    $region20: #{tpu_custom_call.1} parent=1 // pred_region
      %s154 = ssub.s32 256, 256
      %155 = vsyncadd [#allocation4], %s154
      %s157 = sshll.u32 [#allocation7], 4
      %s158 = int_to_ptr.vmem [resolvable:$true] %s157
      %160 = dma.vmem_to_hbm [thread:$0]  %s158, 256, %s2, [#allocation4]
    $region21: #{tpu_custom_call.1} parent=1 // pred_fallthru
      _
    // Predicated region
    $region22: #{tpu_custom_call.1} parent=1 // pred_check
      _
    $region23: #{tpu_custom_call.1} parent=1 // pred_check_branch
      %162 = sbr.rel (0) target = $region25
    $region24: #{tpu_custom_call.1} parent=1 // pred_region
      %163 = dma.done [#allocation4], 256
    $region25: #{tpu_custom_call.1} parent=1 // pred_fallthru
      _
    %164 = vsyncpa [#allocation3], 1
    %165 = vsyncpa [#allocation6], 1
    %166 = vsyncpa [#allocation4], 1

</llo_original>
